<compile_context>
chip_gen: v7x
topology: tpu7x:2x2x1
jax: 0.10.0
libtpu: 0.0.40
codegen_flags: <defaults>
</compile_context>

<pallas_src>
import functools

import jax
import jax.numpy as jnp
import numpy as np
from jax.experimental import pallas as pl
from jax.experimental.pallas import tpu as pltpu


_HALO = 8   # sublane-aligned halo rows for the in-kernel conv1 taps


def _round_up(x, m):
    return (x + m - 1) // m * m


def _cdiv(a, b):
    return -(-a // b)


def _vmem_budget_bytes():
    try:
        cap = pltpu.get_tpu_info().vmem_capacity_bytes
    except Exception:
        cap = 64 * 1024 * 1024          # conservative (v7x-sized) fallback
    return min(int(cap * 3 // 4), 100 * 1024 * 1024)


def _step_vmem_bytes(tt2, s2, f_in, c_pad, n_groups, w2_rows):
    """Rough per-grid-step VMEM footprint (double-buffered IO + live values)."""
    th = tt2 * s2
    io = 2 * ((th + _HALO) * f_in + tt2 * c_pad) * 2                 # bf16 in/out blocks
    wts = 2 * (n_groups * f_in * c_pad + w2_rows * 2 * c_pad) * 2 \
        + 2 * 3 * c_pad * 4                                          # weights + biases
    live = th * c_pad * 10 + tt2 * 2 * c_pad * 4                     # acc1/h/h_bf + acc2
    return io + wts + live


def _encoder_kernel(x_ref, xh_ref, w1_ref, b1_ref, w2_ref, b2_ref, o_ref, *,
                    n_groups, k2, s2, th, tt2, c_pad, t1_out, mask_rows,
                    fused_conv2):
    """One (batch, time-tile) grid step.

    x_ref : (th, F)                bf16  stride-grouped input rows (F = s1*c_in)
    xh_ref: (8, F)                 bf16  halo rows (next n_groups-1 windows)
    w1_ref: (n_groups, F, c_pad)   bf16  conv1 weights, grouped + channel-padded
    b1_ref: (1, c_pad)             f32
    w2_ref: (s2*c_pad, 2*c_pad)    bf16  fused conv2 weights (k2<=s2 path), or
            (k2, c_pad, 2*c_pad)   bf16  per-tap weights (k2>s2 fallback)
    b2_ref: (1, 2*c_pad)           f32   [value | gate] bias
    o_ref : (tt2, c_pad)           bf16  GLU output tile (lane-dense)
    """
    j = pl.program_id(1)

    # ---- conv1: ceil(k1/s1) group matmuls on the MXU, f32 accumulation
    x_main = x_ref[...]
    if n_groups > 1:
        xw = jnp.concatenate([x_main, xh_ref[:n_groups - 1, :]], axis=0)
    else:
        xw = x_main
    acc1 = jnp.dot(xw[0:th], w1_ref[0], preferred_element_type=jnp.float32)
    for g in range(1, n_groups):
        acc1 = acc1 + jnp.dot(xw[g:g + th], w1_ref[g],
                              preferred_element_type=jnp.float32)
    h = jnp.maximum(acc1 + b1_ref[...], 0.0)

    # rows >= t1_out are the odd-length zero-pad row or tile padding: zero them
    # (matches F.pad semantics) without a scratch round-trip.
    if mask_rows:
        row = jax.lax.broadcasted_iota(jnp.int32, (th, 1), 0) + j * th
        h = jnp.where(row < t1_out, h, 0.0)
    h_bf = h.astype(jnp.bfloat16)

    # ---- conv2 (+ bias): one full-width (N = 2*c_pad) dot per tap
    if fused_conv2:                      # k2 <= s2: non-overlapping taps
        h2 = h_bf if s2 == 1 else h_bf.reshape(tt2, s2 * c_pad)
        acc2 = jnp.dot(h2, w2_ref[...], preferred_element_type=jnp.float32)
    else:                                # k2 > s2: overlapping taps (atypical)
        acc2 = None
        for k in range(k2):
            hk = jax.lax.slice_in_dim(h_bf, k, k + (tt2 - 1) * s2 + 1,
                                      stride=s2, axis=0)
            d = jnp.dot(hk, w2_ref[k], preferred_element_type=jnp.float32)
            acc2 = d if acc2 is None else acc2 + d
    acc2 = acc2 + b2_ref[...]

    # ---- GLU along channels; the split at c_pad is 128-lane aligned
    val = acc2[:, :c_pad]
    gate = acc2[:, c_pad:]
    o_ref[...] = (val * jax.nn.sigmoid(gate)).astype(o_ref.dtype)


def encoder_forward(x_nct, w1, b1, w2, b2, *, s1, s2, time_tile=512,
                    native_layout=False):
    """x_nct: (B, C_in, T) (torch layout). w1: (C_out, C_in, K1), w2: (2*C_out, C_out, K2)."""
    B, c_in, t_in = x_nct.shape
    c_out, _, k1 = w1.shape
    c2_out, _, k2 = w2.shape
    assert c2_out == 2 * c_out

    t1_out = (t_in - k1) // s1 + 1
    t1_pad = t1_out + (t1_out % 2)          # pad(x, (0, 1)) when odd
    t2_out = (t1_pad - k2) // s2 + 1

    c_pad = _round_up(c_out, 128)           # lane-dense channel axis
    f_in = s1 * c_in                        # features per stride-group
    n_groups = _cdiv(k1, s1)                # conv1 taps per output row, grouped
    assert n_groups - 1 <= _HALO, "k1/s1 ratio too large for the 8-row halo"
    fused_conv2 = k2 <= s2
    w2_rows = (s2 * c_pad) if fused_conv2 else (k2 * c_pad)
    budget = _vmem_budget_bytes()

    # ---- output-time tile (multiple of 16 rows for bf16 sublane packing)
    if fused_conv2:
        tt2 = max(16, _round_up(min(time_tile, t2_out), 16))
        if B == 1 and t2_out >= 32 and tt2 >= t2_out:
            tt2 = max(16, _round_up(_cdiv(t2_out, 2), 16))   # keep both v7x TCs busy
        while tt2 > 16 and _step_vmem_bytes(tt2, s2, f_in, c_pad,
                                            n_groups, w2_rows) > budget:
            tt2 = max(16, _round_up(tt2 // 2, 16))
        t2_total = _round_up(t2_out, tt2)
        n_tj = t2_total // tt2
        th = tt2 * s2                        # hidden rows per tile (disjoint)
    else:
        # overlapping conv2 windows: single time tile (not a demucs config)
        tt2 = _round_up(t2_out, 8)
        t2_total = tt2
        n_tj = 1
        th = _round_up(max(t1_pad, (tt2 - 1) * s2 + k2), 8)
    hid_total = n_tj * th

    # ---- input: one transpose + pad + stride-group reshape, bf16 (no im2col dup)
    r_total = hid_total + _HALO
    t_need = r_total * s1
    x_btc = jnp.transpose(x_nct, (0, 2, 1)).astype(jnp.bfloat16)   # (B, T, C_in)
    if t_need > t_in:
        x_btc = jnp.pad(x_btc, ((0, 0), (0, t_need - t_in), (0, 0)))
    elif t_need < t_in:
        x_btc = x_btc[:, :t_need]        # tail samples can't reach any output row
    x_r = x_btc.reshape(B, r_total, f_in)

    # ---- conv1 weights: grouped-tap layout (n_groups, s1*c_in, c_pad)
    w1_t = jnp.transpose(w1, (2, 1, 0)).astype(jnp.float32)        # (K1, C_in, C_out)
    w1_t = jnp.pad(w1_t, ((0, n_groups * s1 - k1), (0, 0), (0, c_pad - c_out)))
    w1_g = w1_t.reshape(n_groups, f_in, c_pad).astype(jnp.bfloat16)
    b1_r = jnp.pad(b1.astype(jnp.float32), (0, c_pad - c_out)).reshape(1, c_pad)

    # ---- conv2 weights: value|gate concatenated -> one N = 2*c_pad dot per tap
    w2_t = jnp.transpose(w2, (2, 1, 0)).astype(jnp.float32)        # (K2, C_out, 2*C_out)
    padc = ((0, 0), (0, c_pad - c_out), (0, c_pad - c_out))
    w2_cat = jnp.concatenate([jnp.pad(w2_t[:, :, :c_out], padc),
                              jnp.pad(w2_t[:, :, c_out:], padc)], axis=-1)
    if fused_conv2:
        w2_cat = jnp.pad(w2_cat, ((0, s2 - k2), (0, 0), (0, 0)))
        w2_k = w2_cat.reshape(s2 * c_pad, 2 * c_pad).astype(jnp.bfloat16)
        w2_spec = pl.BlockSpec((s2 * c_pad, 2 * c_pad), lambda b, j: (0, 0))
    else:
        w2_k = w2_cat.astype(jnp.bfloat16)
        w2_spec = pl.BlockSpec((k2, c_pad, 2 * c_pad), lambda b, j: (0, 0, 0))
    b2_r = jnp.concatenate([
        jnp.pad(b2[:c_out].astype(jnp.float32), (0, c_pad - c_out)),
        jnp.pad(b2[c_out:].astype(jnp.float32), (0, c_pad - c_out)),
    ]).reshape(1, 2 * c_pad)

    kernel = functools.partial(
        _encoder_kernel, n_groups=n_groups, k2=k2, s2=s2, th=th, tt2=tt2,
        c_pad=c_pad, t1_out=t1_out, mask_rows=(hid_total > t1_out),
        fused_conv2=fused_conv2)

    halo_blk = th // _HALO
    out_padded = pl.pallas_call(
        kernel,
        out_shape=jax.ShapeDtypeStruct((B, t2_total, c_pad), jnp.bfloat16),
        grid_spec=pltpu.PrefetchScalarGridSpec(
            num_scalar_prefetch=0,
            grid=(B, n_tj),
            in_specs=[
                pl.BlockSpec((None, th, f_in), lambda b, j: (b, j, 0)),
                pl.BlockSpec((None, _HALO, f_in),
                             lambda b, j: (b, (j + 1) * halo_blk, 0)),
                # constant-index weights/biases (v7x could use pl.Buffered(1)
                # here to reclaim VMEM; kept default for portability)
                pl.BlockSpec((n_groups, f_in, c_pad), lambda b, j: (0, 0, 0)),
                pl.BlockSpec((1, c_pad), lambda b, j: (0, 0)),
                w2_spec,
                pl.BlockSpec((1, 2 * c_pad), lambda b, j: (0, 0)),
            ],
            out_specs=pl.BlockSpec((None, tt2, c_pad), lambda b, j: (b, j, 0)),
        ),
        compiler_params=pltpu.CompilerParams(
            dimension_semantics=("parallel", "parallel"),
            vmem_limit_bytes=budget),
    )(x_r, x_r, w1_g, b1_r, w2_k, b2_r)

    if native_layout:
        # padded, time-major bf16 output — feed the next encoder layer directly
        return out_padded
    # strip channel/time padding, back to PyTorch NCT layout
    out = out_padded[:, :t2_out, :c_out]
    return jnp.transpose(out, (0, 2, 1))


def encoder_reference(x_nct, w1, b1, w2, b2, *, s1, s2):
    """Pure-JAX f32 reference matching torch semantics (NCT conv1d, GLU dim=-2)."""
    y = jax.lax.conv_general_dilated(
        x_nct, w1, window_strides=(s1,), padding="VALID",
        dimension_numbers=("NCH", "OIH", "NCH"))
    y = y + b1[None, :, None]
    y = jnp.maximum(y, 0.0)
    if y.shape[-1] % 2 == 1:
        y = jnp.pad(y, ((0, 0), (0, 0), (0, 1)))
    z = jax.lax.conv_general_dilated(
        y, w2, window_strides=(s2,), padding="VALID",
        dimension_numbers=("NCH", "OIH", "NCH"))
    z = z + b2[None, :, None]
    c = z.shape[1] // 2
    return z[:, :c, :] * jax.nn.sigmoid(z[:, c:, :])


if __name__ == "__main__":
    # cfg = {'conv1': {'kernel_size': 8, 'stride': 4},
    #        'conv2': {'kernel_size': 1, 'stride': 1}}  (typical demucs encoder block)
    B, C_IN, C_OUT, T = 2, 2, 8, 160
    K1, S1 = 8, 4
    K2, S2 = 1, 1

    key = jax.random.PRNGKey(0)
    k_x, k_w1, k_b1, k_w2, k_b2 = jax.random.split(key, 5)
    x = jax.random.normal(k_x, (B, C_IN, T), jnp.float32)
    w1 = jax.random.normal(k_w1, (C_OUT, C_IN, K1), jnp.float32) * 0.2   # torch (Cout, Cin, K)
    b1 = jax.random.normal(k_b1, (C_OUT,), jnp.float32) * 0.1
    w2 = jax.random.normal(k_w2, (2 * C_OUT, C_OUT, K2), jnp.float32) * 0.2
    b2 = jax.random.normal(k_b2, (2 * C_OUT,), jnp.float32) * 0.1

    # small time_tile so the tiny test still exercises a multi-tile grid,
    # the cross-tile halo and the pad-row mask
    out = encoder_forward(x, w1, b1, w2, b2, s1=S1, s2=S2, time_tile=16)
    out = jax.block_until_ready(out)

    ref = encoder_reference(x, w1, b1, w2, b2, s1=S1, s2=S2)
    assert out.shape == ref.shape, (out.shape, ref.shape)
    # bf16 matmul inputs + bf16 output with f32 accumulation -> loose tolerance
    np.testing.assert_allclose(np.asarray(out).astype(np.float32),
                               np.asarray(ref), rtol=3e-2, atol=3e-2)
    print("KERNEL_OK")
</pallas_src>

<mosaic_0001>
module attributes {stable_mosaic.version = 11 : i64} {
  func.func @_encoder_kernel(%arg0: i32, %arg1: i32, %arg2: memref<1x16x8xbf16, #tpu.memory_space<vmem>>, %arg3: memref<1x8x8xbf16, #tpu.memory_space<vmem>>, %arg4: memref<2x8x128xbf16, #tpu.memory_space<vmem>>, %arg5: memref<1x128xf32, #tpu.memory_space<vmem>>, %arg6: memref<128x256xbf16, #tpu.memory_space<vmem>>, %arg7: memref<1x256xf32, #tpu.memory_space<vmem>>, %arg8: memref<1x16x128xbf16, #tpu.memory_space<vmem>>) attributes {dimension_semantics = [#tpu.dimension_semantics<parallel>, #tpu.dimension_semantics<parallel>], iteration_bounds = array<i64: 2, 3>, scalar_prefetch = 0 : i64, scratch_operands = 0 : i64, tpu.core_type = #tpu.core_type<tc>, window_params = [{transform_indices = @transform_0, window_bounds = array<i64: 1, 16, 8>}, {transform_indices = @transform_1, window_bounds = array<i64: 1, 8, 8>}, {pipeline_mode = #tpu.pipeline_mode<synchronous>, transform_indices = @transform_2, window_bounds = array<i64: 2, 8, 128>}, {pipeline_mode = #tpu.pipeline_mode<synchronous>, transform_indices = @transform_3, window_bounds = array<i64: 1, 128>}, {pipeline_mode = #tpu.pipeline_mode<synchronous>, transform_indices = @transform_4, window_bounds = array<i64: 128, 256>}, {pipeline_mode = #tpu.pipeline_mode<synchronous>, transform_indices = @transform_5, window_bounds = array<i64: 1, 256>}, {transform_indices = @transform_6, window_bounds = array<i64: 1, 16, 128>}]} {
    %c0 = arith.constant 0 : index
    %c0_0 = arith.constant 0 : index
    %c0_1 = arith.constant 0 : index
    %0 = vector.load %arg2[%c0, %c0_0, %c0_1] : memref<1x16x8xbf16, #tpu.memory_space<vmem>>, vector<1x16x8xbf16>
    %1 = vector.shape_cast %0 : vector<1x16x8xbf16> to vector<16x8xbf16>
    %c0_2 = arith.constant 0 : index
    %c0_3 = arith.constant 0 : index
    %c0_4 = arith.constant 0 : index
    %2 = vector.load %arg3[%c0_2, %c0_3, %c0_4] : memref<1x8x8xbf16, #tpu.memory_space<vmem>>, vector<1x1x8xbf16>
    %3 = vector.shape_cast %2 : vector<1x1x8xbf16> to vector<1x8xbf16>
    %4 = tpu.concatenate %1, %3 in 0 : vector<16x8xbf16>, vector<1x8xbf16> -> vector<17x8xbf16>
    %5 = vector.extract_strided_slice %4 {offsets = [0, 0], sizes = [16, 8], strides = [1, 1]} : vector<17x8xbf16> to vector<16x8xbf16>
    %c0_5 = arith.constant 0 : index
    %c0_6 = arith.constant 0 : index
    %c0_7 = arith.constant 0 : index
    %6 = vector.load %arg4[%c0_5, %c0_6, %c0_7] : memref<2x8x128xbf16, #tpu.memory_space<vmem>>, vector<1x8x128xbf16>
    %7 = vector.shape_cast %6 : vector<1x8x128xbf16> to vector<8x128xbf16>
    %cst = arith.constant dense<0.000000e+00> : vector<16x128xf32>
    %8 = tpu.matmul %5, %7, %cst {dimension_numbers = #tpu.dot_dimension_numbers<[1], [0], [0], [1], [0, 0, 1, 1], [], []>} : vector<16x8xbf16>, vector<8x128xbf16>, vector<16x128xf32> -> vector<16x128xf32>
    %9 = vector.extract_strided_slice %4 {offsets = [1, 0], sizes = [16, 8], strides = [1, 1]} : vector<17x8xbf16> to vector<16x8xbf16>
    %c1 = arith.constant 1 : index
    %c0_8 = arith.constant 0 : index
    %c0_9 = arith.constant 0 : index
    %10 = vector.load %arg4[%c1, %c0_8, %c0_9] : memref<2x8x128xbf16, #tpu.memory_space<vmem>>, vector<1x8x128xbf16>
    %11 = vector.shape_cast %10 : vector<1x8x128xbf16> to vector<8x128xbf16>
    %cst_10 = arith.constant dense<0.000000e+00> : vector<16x128xf32>
    %12 = tpu.matmul %9, %11, %cst_10 {dimension_numbers = #tpu.dot_dimension_numbers<[1], [0], [0], [1], [0, 0, 1, 1], [], []>} : vector<16x8xbf16>, vector<8x128xbf16>, vector<16x128xf32> -> vector<16x128xf32>
    %13 = arith.addf %8, %12 : vector<16x128xf32>
    %c0_11 = arith.constant 0 : index
    %c0_12 = arith.constant 0 : index
    %14 = vector.load %arg5[%c0_11, %c0_12] : memref<1x128xf32, #tpu.memory_space<vmem>>, vector<1x128xf32>
    %15 = vector.broadcast %14 : vector<1x128xf32> to vector<16x128xf32>
    %16 = arith.addf %13, %15 : vector<16x128xf32>
    %cst_13 = arith.constant 0.000000e+00 : f32
    %17 = vector.broadcast %cst_13 : f32 to vector<16x128xf32>
    %18 = arith.maximumf %16, %17 : vector<16x128xf32>
    %19 = tpu.iota {dimensions = array<i32: 0>} : vector<16x1xi32>
    %c16_i32 = arith.constant 16 : i32
    %20 = arith.muli %arg1, %c16_i32 : i32
    %21 = vector.broadcast %20 : i32 to vector<16x1xi32>
    %22 = arith.addi %19, %21 : vector<16x1xi32>
    %c39_i32 = arith.constant 39 : i32
    %23 = vector.broadcast %c39_i32 : i32 to vector<16x1xi32>
    %24 = arith.cmpi slt, %22, %23 : vector<16x1xi32>
    %cst_14 = arith.constant 0.000000e+00 : f32
    %25 = vector.shape_cast %24 : vector<16x1xi1> to vector<16x1xi1>
    %26 = vector.broadcast %25 : vector<16x1xi1> to vector<16x128xi1>
    %27 = vector.broadcast %cst_14 : f32 to vector<16x128xf32>
    %28 = arith.select %26, %18, %27 : vector<16x128xi1>, vector<16x128xf32>
    %29 = arith.truncf %28 : vector<16x128xf32> to vector<16x128xbf16>
    %c0_15 = arith.constant 0 : index
    %c0_16 = arith.constant 0 : index
    %30 = vector.load %arg6[%c0_15, %c0_16] : memref<128x256xbf16, #tpu.memory_space<vmem>>, vector<128x256xbf16>
    %cst_17 = arith.constant dense<0.000000e+00> : vector<16x256xf32>
    %31 = tpu.matmul %29, %30, %cst_17 {dimension_numbers = #tpu.dot_dimension_numbers<[1], [0], [0], [1], [0, 0, 1, 1], [], []>} : vector<16x128xbf16>, vector<128x256xbf16>, vector<16x256xf32> -> vector<16x256xf32>
    %c0_18 = arith.constant 0 : index
    %c0_19 = arith.constant 0 : index
    %32 = vector.load %arg7[%c0_18, %c0_19] : memref<1x256xf32, #tpu.memory_space<vmem>>, vector<1x256xf32>
    %33 = vector.broadcast %32 : vector<1x256xf32> to vector<16x256xf32>
    %34 = arith.addf %31, %33 : vector<16x256xf32>
    %35 = vector.extract_strided_slice %34 {offsets = [0, 0], sizes = [16, 128], strides = [1, 1]} : vector<16x256xf32> to vector<16x128xf32>
    %36 = vector.extract_strided_slice %34 {offsets = [0, 128], sizes = [16, 128], strides = [1, 1]} : vector<16x256xf32> to vector<16x128xf32>
    %37 = arith.negf %36 : vector<16x128xf32>
    %38 = math.exp %37 : vector<16x128xf32>
    %cst_20 = arith.constant 1.000000e+00 : f32
    %39 = vector.broadcast %cst_20 : f32 to vector<16x128xf32>
    %40 = arith.addf %39, %38 : vector<16x128xf32>
    %41 = arith.divf %39, %40 : vector<16x128xf32>
    %42 = arith.mulf %35, %41 : vector<16x128xf32>
    %43 = arith.truncf %42 : vector<16x128xf32> to vector<16x128xbf16>
    %c0_21 = arith.constant 0 : index
    %c0_22 = arith.constant 0 : index
    %c0_23 = arith.constant 0 : index
    %44 = vector.load %arg8[%c0_21, %c0_22, %c0_23] : memref<1x16x128xbf16, #tpu.memory_space<vmem>>, vector<1x16x128xbf16>
    %45 = vector.shape_cast %44 : vector<1x16x128xbf16> to vector<16x128xbf16>
    %46 = vector.shape_cast %43 : vector<16x128xbf16> to vector<1x16x128xbf16>
    tpu.vector_store %arg8[%c0_21, %c0_22, %c0_23], %46 {strides = array<i32>} : memref<1x16x128xbf16, #tpu.memory_space<vmem>>, vector<1x16x128xbf16>,
    return
  }
  func.func @transform_0(%arg0: i32, %arg1: i32) -> (i32, i32, i32) {
    %c0_i32 = arith.constant 0 : i32
    %c0_i32_0 = arith.constant 0 : i32
    return %arg0, %arg1, %c0_i32 : i32, i32, i32
  }
  func.func @transform_1(%arg0: i32, %arg1: i32) -> (i32, i32, i32) {
    %c1_i32 = arith.constant 1 : i32
    %0 = arith.addi %arg1, %c1_i32 : i32
    %c2_i32 = arith.constant 2 : i32
    %1 = arith.muli %0, %c2_i32 : i32
    %c0_i32 = arith.constant 0 : i32
    %c0_i32_0 = arith.constant 0 : i32
    return %arg0, %1, %c0_i32 : i32, i32, i32
  }
  func.func @transform_2(%arg0: i32, %arg1: i32) -> (i32, i32, i32) {
    %c0_i32 = arith.constant 0 : i32
    %c0_i32_0 = arith.constant 0 : i32
    %c0_i32_1 = arith.constant 0 : i32
    %c0_i32_2 = arith.constant 0 : i32
    return %c0_i32, %c0_i32_0, %c0_i32_1 : i32, i32, i32
  }
  func.func @transform_3(%arg0: i32, %arg1: i32) -> (i32, i32) {
    %c0_i32 = arith.constant 0 : i32
    %c0_i32_0 = arith.constant 0 : i32
    %c0_i32_1 = arith.constant 0 : i32
    return %c0_i32, %c0_i32_0 : i32, i32
  }
  func.func @transform_4(%arg0: i32, %arg1: i32) -> (i32, i32) {
    %c0_i32 = arith.constant 0 : i32
    %c0_i32_0 = arith.constant 0 : i32
    %c0_i32_1 = arith.constant 0 : i32
    return %c0_i32, %c0_i32_0 : i32, i32
  }
  func.func @transform_5(%arg0: i32, %arg1: i32) -> (i32, i32) {
    %c0_i32 = arith.constant 0 : i32
    %c0_i32_0 = arith.constant 0 : i32
    %c0_i32_1 = arith.constant 0 : i32
    return %c0_i32, %c0_i32_0 : i32, i32
  }
  func.func @transform_6(%arg0: i32, %arg1: i32) -> (i32, i32, i32) {
    %c0_i32 = arith.constant 0 : i32
    %c0_i32_0 = arith.constant 0 : i32
    return %arg0, %arg1, %c0_i32 : i32, i32, i32
  }
}

</mosaic_0001>

<llo_original>
// kernel: tpu_custom_call.1
$region0: #{tpu_custom_call.1}
  #allocation0 [shape = 'u32[]', space=smem, size = 0x4, offset = 0x4, fixed_abs, tag = 'smem constant byte address 0x4 - core index']
  #allocation1 [shape = 'u32[144,128]{1,0:T(1,128)}', space=vmem, size = 0x12000, scoped, tag = 'internal scratch']
  %s0 = inlined_call_operand.vmem [shape: bf16[2,56,8], index: 0, kind: input, shape index: {}]
  %s1 = inlined_call_operand.vmem [shape: bf16[2,56,8], index: 1, kind: input, shape index: {}]
  %s2 = inlined_call_operand.vmem [shape: bf16[2,8,128], index: 2, kind: input, shape index: {}]
  %s3 = inlined_call_operand.vmem [shape: f32[1,128], index: 3, kind: input, shape index: {}]
  %s4 = inlined_call_operand.vmem [shape: bf16[128,256], index: 4, kind: input, shape index: {}]
  %s5 = inlined_call_operand.vmem [shape: f32[1,256], index: 5, kind: input, shape index: {}]
  %s6 = inlined_call_operand.hbm [shape: bf16[2,48,128], index: 6, kind: output, shape index: {}]
  %s7 = sld [smem:[#allocation0]]
  $region57: #{tpu_custom_call.1} parent=0
    _
  %s9 = ssub.s32 1, %s7
  %s10 = scalar_select 0, %s9, %s7
  $region1: #{tpu_custom_call.1} parent=0
    #allocation2 [shape = 'u8[8192]{0}', space=vmem, size = 0x2000, scoped, tag = 'output window, operand 0']
    #allocation3 [shape = 's32[2]{0}', space=sflag, size = 0x8, scoped, tag = 'scoped memory for tpu_custom_call.1']
    %11 = vsyncpa [#allocation3], 0
    %s12 = scalar_lea.sflag [#allocation3], 1
    %13 = vsyncpa %s12, 0
    loop: start=0, step=1, limit=8
    $region2: #{tpu_custom_call.1} parent=1 // loop_pre_header
      _
    $region3: #{tpu_custom_call.1} parent=1 // loop_header
      %s15 = sphi 0, %s19
      %p16 = scmp.ge.s32.totalorder %s15, 8
      %s22 = sphi 0, %s34
      %s23 = sphi 0, %s30
      %s24 = sphi 0, %s22
      %s25 = sphi 0, %s23
      %s26 = sphi 0, %s24
      %s27 = sphi 0, %s25
      %s39 = sphi 0, %s41
      %s42 = sphi 0, %s39
      %s43 = sphi 0, %s42
      %s59 = sphi 0, %s43
      %s71 = sphi 0, %s73
      %s74 = sphi 0, %s71
      %s75 = sphi 0, %s74
      %s91 = sphi 0, %s75
      %s95 = sphi 0, %s95
      %s97 = sphi 0, %s95
      %s98 = sphi 0, %s97
      %s112 = sphi 0, %s98
      %s116 = sphi 0, %s116
      %s118 = sphi 0, %s116
      %s119 = sphi 0, %s118
      %s133 = sphi 0, %s119
      %s137 = sphi 0, %s137
      %s139 = sphi 0, %s137
      %s140 = sphi 0, %s139
      %s154 = sphi 0, %s140
      %s158 = sphi 0, %s158
      %s160 = sphi 0, %s158
      %s161 = sphi 0, %s160
      %s175 = sphi 0, %s161
      %s183 = sphi 0, %s185
      %s186 = sphi 0, %s183
      %s187 = sphi 0, %s186
      %s203 = sphi 0, %s187
    $region4: #{tpu_custom_call.1} parent=1 // loop_header_branch
      %18 = sbr.rel (%p16) target = $region8
    $region5: #{tpu_custom_call.1} parent=1 // loop_body
      %s20 = ssub.s32 %s15, 1
      %s21 = ssub.s32 %s15, 2
      %s28 = sadd.s32 1, %s23
      %p29 = scmp.ge.s32.totalorder %s28, 3
      %s30 = scalar_select %p29, 0, %s28
      %s31 = sadd.s32 1, %s22
      %s32 = scalar_select %p29, %s31, %s22
      %p33 = scmp.ge.s32.totalorder %s32, 2
      %s34 = scalar_select %p33, 0, %s32
      %s35 = ssub.s32 %s22, %s34
      %s36 = ssub.s32 %s23, %s30
      %s37 = sor.u32 %s35, %s36
      %p38 = scmp.eq.s32.totalorder %s37, 0
      %s40 = sadd.s32 %s39, 1
      %s41 = scalar_select %p38, %s39, %s40
      %p44 = pneg %p38
      %p45 = scmp.eq.s32.totalorder %s15, 5
      %p46 = por %p44, %p45
      %p47 = scmp.ne.s32.totalorder %s39, %s42
      %p48 = scmp.eq.s32.totalorder %s15, 0
      %p49 = por %p47, %p48
      %p50 = scmp.ne.s32.totalorder %s39, %s42
      %p51 = scmp.eq.s32.totalorder %s20, 5
      %p52 = por %p50, %p51
      %p53 = scmp.ne.s32.totalorder %s42, %s43
      %p54 = scmp.eq.s32.totalorder %s20, 0
      %p55 = por %p53, %p54
      %p56 = scmp.ne.s32.totalorder %s42, %s43
      %p57 = scmp.eq.s32.totalorder %s21, 5
      %p58 = por %p56, %p57
      %p60 = scmp.ne.s32.totalorder %s43, %s59
      %p61 = scmp.eq.s32.totalorder %s21, 0
      %p62 = por %p60, %p61
      %s63 = sadd.s32 %s23, 1
      %s64 = smul.u32 %s63, 2
      %s65 = sadd.s32 %s30, 1
      %s66 = smul.u32 %s65, 2
      %s67 = ssub.s32 %s22, %s34
      %s68 = ssub.s32 %s64, %s66
      %s69 = sor.u32 %s67, %s68
      %p70 = scmp.eq.s32.totalorder %s69, 0
      %s72 = sadd.s32 %s71, 1
      %s73 = scalar_select %p70, %s71, %s72
      %p76 = pneg %p70
      %p77 = scmp.eq.s32.totalorder %s15, 5
      %p78 = por %p76, %p77
      %p79 = scmp.ne.s32.totalorder %s71, %s74
      %p80 = scmp.eq.s32.totalorder %s15, 0
      %p81 = por %p79, %p80
      %p82 = scmp.ne.s32.totalorder %s71, %s74
      %p83 = scmp.eq.s32.totalorder %s20, 5
      %p84 = por %p82, %p83
      %p85 = scmp.ne.s32.totalorder %s74, %s75
      %p86 = scmp.eq.s32.totalorder %s20, 0
      %p87 = por %p85, %p86
      %p88 = scmp.ne.s32.totalorder %s74, %s75
      %p89 = scmp.eq.s32.totalorder %s21, 5
      %p90 = por %p88, %p89
      %p92 = scmp.ne.s32.totalorder %s75, %s91
      %p93 = scmp.eq.s32.totalorder %s21, 0
      %p94 = por %p92, %p93
      %s96 = sadd.s32 %s95, 1
      %p99 = scmp.eq.s32.totalorder %s15, 5
      %p100 = scmp.ne.s32.totalorder %s95, %s97
      %p101 = scmp.eq.s32.totalorder %s15, 0
      %p102 = por %p100, %p101
      %p103 = scmp.ne.s32.totalorder %s95, %s97
      %p104 = scmp.eq.s32.totalorder %s20, 5
      %p105 = por %p103, %p104
      %p106 = scmp.ne.s32.totalorder %s97, %s98
      %p107 = scmp.eq.s32.totalorder %s20, 0
      %p108 = por %p106, %p107
      %p109 = scmp.ne.s32.totalorder %s97, %s98
      %p110 = scmp.eq.s32.totalorder %s21, 5
      %p111 = por %p109, %p110
      %p113 = scmp.ne.s32.totalorder %s98, %s112
      %p114 = scmp.eq.s32.totalorder %s21, 0
      %p115 = por %p113, %p114
      %s117 = sadd.s32 %s116, 1
      %p120 = scmp.eq.s32.totalorder %s15, 5
      %p121 = scmp.ne.s32.totalorder %s116, %s118
      %p122 = scmp.eq.s32.totalorder %s15, 0
      %p123 = por %p121, %p122
      %p124 = scmp.ne.s32.totalorder %s116, %s118
      %p125 = scmp.eq.s32.totalorder %s20, 5
      %p126 = por %p124, %p125
      %p127 = scmp.ne.s32.totalorder %s118, %s119
      %p128 = scmp.eq.s32.totalorder %s20, 0
      %p129 = por %p127, %p128
      %p130 = scmp.ne.s32.totalorder %s118, %s119
      %p131 = scmp.eq.s32.totalorder %s21, 5
      %p132 = por %p130, %p131
      %p134 = scmp.ne.s32.totalorder %s119, %s133
      %p135 = scmp.eq.s32.totalorder %s21, 0
      %p136 = por %p134, %p135
      %s138 = sadd.s32 %s137, 1
      %p141 = scmp.eq.s32.totalorder %s15, 5
      %p142 = scmp.ne.s32.totalorder %s137, %s139
      %p143 = scmp.eq.s32.totalorder %s15, 0
      %p144 = por %p142, %p143
      %p145 = scmp.ne.s32.totalorder %s137, %s139
      %p146 = scmp.eq.s32.totalorder %s20, 5
      %p147 = por %p145, %p146
      %p148 = scmp.ne.s32.totalorder %s139, %s140
      %p149 = scmp.eq.s32.totalorder %s20, 0
      %p150 = por %p148, %p149
      %p151 = scmp.ne.s32.totalorder %s139, %s140
      %p152 = scmp.eq.s32.totalorder %s21, 5
      %p153 = por %p151, %p152
      %p155 = scmp.ne.s32.totalorder %s140, %s154
      %p156 = scmp.eq.s32.totalorder %s21, 0
      %p157 = por %p155, %p156
      %s159 = sadd.s32 %s158, 1
      %p162 = scmp.eq.s32.totalorder %s15, 5
      %p163 = scmp.ne.s32.totalorder %s158, %s160
      %p164 = scmp.eq.s32.totalorder %s15, 0
      %p165 = por %p163, %p164
      %p166 = scmp.ne.s32.totalorder %s158, %s160
      %p167 = scmp.eq.s32.totalorder %s20, 5
      %p168 = por %p166, %p167
      %p169 = scmp.ne.s32.totalorder %s160, %s161
      %p170 = scmp.eq.s32.totalorder %s20, 0
      %p171 = por %p169, %p170
      %p172 = scmp.ne.s32.totalorder %s160, %s161
      %p173 = scmp.eq.s32.totalorder %s21, 5
      %p174 = por %p172, %p173
      %p176 = scmp.ne.s32.totalorder %s161, %s175
      %p177 = scmp.eq.s32.totalorder %s21, 0
      %p178 = por %p176, %p177
      %s179 = ssub.s32 %s22, %s34
      %s180 = ssub.s32 %s23, %s30
      %s181 = sor.u32 %s179, %s180
      %p182 = scmp.eq.s32.totalorder %s181, 0
      %s184 = sadd.s32 %s183, 1
      %s185 = scalar_select %p182, %s183, %s184
      %p188 = pneg %p182
      %p189 = scmp.eq.s32.totalorder %s15, 5
      %p190 = por %p188, %p189
      %p191 = scmp.ne.s32.totalorder %s183, %s186
      %p192 = scmp.eq.s32.totalorder %s15, 0
      %p193 = por %p191, %p192
      %p194 = scmp.ne.s32.totalorder %s183, %s186
      %p195 = scmp.eq.s32.totalorder %s20, 5
      %p196 = por %p194, %p195
      %p197 = scmp.ne.s32.totalorder %s186, %s187
      %p198 = scmp.eq.s32.totalorder %s20, 0
      %p199 = por %p197, %p198
      %p200 = scmp.ne.s32.totalorder %s186, %s187
      %p201 = scmp.eq.s32.totalorder %s21, 5
      %p202 = por %p200, %p201
      %p204 = scmp.ne.s32.totalorder %s187, %s203
      %p205 = scmp.eq.s32.totalorder %s21, 0
      %p206 = por %p204, %p205
      %p207 = scmp.le.s32.totalorder 1, %s15
      %p208 = scmp.lt.s32.totalorder %s15, 7
      %p209 = pnand %p207, %p208
      %p210 = pneg %p209
      // Predicated region
      $region9: #{tpu_custom_call.1} parent=5 // pred_check
        _
      $region10: #{tpu_custom_call.1} parent=5 // pred_check_branch
        %212 = sbr.rel (%p209) target = $region12
      $region11: #{tpu_custom_call.1} parent=5 // pred_region
        %s213 = ssub.s32 %s15, 1
        // Predicated region
        $region13: #{tpu_custom_call.1} parent=11 // pred_check
          %p214 = pneg %p108
        $region14: #{tpu_custom_call.1} parent=11 // pred_check_branch
          %216 = sbr.rel (%p214) target = $region16
        $region15: #{tpu_custom_call.1} parent=11 // pred_region
          _
        $region16: #{tpu_custom_call.1} parent=11 // pred_fallthru
          _
        // Predicated region
        $region17: #{tpu_custom_call.1} parent=11 // pred_check
          %p217 = pneg %p129
        $region18: #{tpu_custom_call.1} parent=11 // pred_check_branch
          %219 = sbr.rel (%p217) target = $region20
        $region19: #{tpu_custom_call.1} parent=11 // pred_region
          _
        $region20: #{tpu_custom_call.1} parent=11 // pred_fallthru
          _
        // Predicated region
        $region21: #{tpu_custom_call.1} parent=11 // pred_check
          %p220 = pneg %p150
        $region22: #{tpu_custom_call.1} parent=11 // pred_check_branch
          %222 = sbr.rel (%p220) target = $region24
        $region23: #{tpu_custom_call.1} parent=11 // pred_region
          _
        $region24: #{tpu_custom_call.1} parent=11 // pred_fallthru
          _
        // Predicated region
        $region25: #{tpu_custom_call.1} parent=11 // pred_check
          %p223 = pneg %p171
        $region26: #{tpu_custom_call.1} parent=11 // pred_check_branch
          %225 = sbr.rel (%p223) target = $region28
        $region27: #{tpu_custom_call.1} parent=11 // pred_region
          _
        $region28: #{tpu_custom_call.1} parent=11 // pred_fallthru
          _
      $region12: #{tpu_custom_call.1} parent=5 // pred_fallthru
        _
      %p226 = scmp.lt.s32.totalorder %s15, 6
      // Predicated region
      $region29: #{tpu_custom_call.1} parent=5 // pred_check
        %p227 = pneg %p226
      $region30: #{tpu_custom_call.1} parent=5 // pred_check_branch
        %229 = sbr.rel (%p227) target = $region32
      $region31: #{tpu_custom_call.1} parent=5 // pred_region
        // Predicated region
        $region33: #{tpu_custom_call.1} parent=31 // pred_check
          %p230 = pneg %p49
        $region34: #{tpu_custom_call.1} parent=31 // pred_check_branch
          %232 = sbr.rel (%p230) target = $region36
        $region35: #{tpu_custom_call.1} parent=31 // pred_region
          %s233 = smul.u32 2, %s23
          %s234 = ssub.s32 7, %s233
          %p235 = scmp.lt.s32.totalorder %s234, 2
          %s236 = scalar_select %p235, %s234, 2
          %s237 = smul.u32 64, %s236
          %p238 = scmp.lt.s32.totalorder %s22, 1
          %s239 = scalar_select %p238, %s22, 1
          %p240 = scmp.lt.s32.totalorder %s233, 6
          %s241 = scalar_select %p240, %s233, 6
          %s242 = smul.addr %s239, 7
          %s243 = sadd.s32 %s241, %s242
          %s244 = smul.addr %s243, 4
          %s245 = scalar_lea.vmem %s0, %s244
          %s246 = smul.u32 2, %s23
          %s247 = ssub.s32 7, %s246
          %p248 = scmp.lt.s32.totalorder %s247, 2
          %s249 = scalar_select %p248, %s247, 2
          %s250 = smul.u32 64, %s249
        $region36: #{tpu_custom_call.1} parent=31 // pred_fallthru
          _
        // Predicated region
        $region37: #{tpu_custom_call.1} parent=31 // pred_check
          %p251 = pneg %p81
        $region38: #{tpu_custom_call.1} parent=31 // pred_check_branch
          %253 = sbr.rel (%p251) target = $region40
        $region39: #{tpu_custom_call.1} parent=31 // pred_region
          %s254 = sadd.s32 %s23, 1
          %s255 = smul.u32 %s254, 2
          %p256 = scmp.lt.s32.totalorder %s22, 1
          %s257 = scalar_select %p256, %s22, 1
          %p258 = scmp.lt.s32.totalorder %s255, 6
          %s259 = scalar_select %p258, %s255, 6
          %s260 = smul.addr %s257, 7
          %s261 = sadd.s32 %s259, %s260
          %s262 = smul.addr %s261, 4
          %s263 = scalar_lea.vmem %s1, %s262
          %s264 = sadd.s32 %s23, 1
          %s265 = smul.u32 %s264, 2
        $region40: #{tpu_custom_call.1} parent=31 // pred_fallthru
          _
      $region32: #{tpu_custom_call.1} parent=5 // pred_fallthru
        _
      %p266 = scmp.le.s32.totalorder 1, %s15
      %p267 = scmp.lt.s32.totalorder %s15, 7
      %p268 = pnand %p266, %p267
      %p269 = pneg %p268
      // Predicated region
      $region41: #{tpu_custom_call.1} parent=5 // pred_check
        _
      $region42: #{tpu_custom_call.1} parent=5 // pred_check_branch
        %271 = sbr.rel (%p268) target = $region44
      $region43: #{tpu_custom_call.1} parent=5 // pred_region
        %s272 = ssub.s32 %s15, 1
        %s273 = smul.u32 2, %s25
        %s274 = ssub.s32 7, %s273
        %p275 = scmp.lt.s32.totalorder %s274, 2
        %s276 = scalar_select %p275, %s274, 2
        %s277 = smul.u32 64, %s276
        %p278 = scmp.lt.s32.totalorder %s24, 1
        %s279 = scalar_select %p278, %s24, 1
        %p280 = scmp.lt.s32.totalorder %s273, 6
        %s281 = scalar_select %p280, %s273, 6
        %s282 = smul.addr %s279, 7
        %s283 = sadd.s32 %s281, %s282
        %s284 = smul.addr %s283, 4
        %s285 = scalar_lea.vmem %s0, %s284
        %p286 = pneg %p55
        %p287 = pneg %p52
        %s288 = sadd.s32 %s25, 1
        %s289 = smul.u32 %s288, 2
        %p290 = scmp.lt.s32.totalorder %s24, 1
        %s291 = scalar_select %p290, %s24, 1
        %p292 = scmp.lt.s32.totalorder %s289, 6
        %s293 = scalar_select %p292, %s289, 6
        %s294 = smul.addr %s291, 7
        %s295 = sadd.s32 %s293, %s294
        %s296 = smul.addr %s295, 4
        %s297 = scalar_lea.vmem %s1, %s296
        %p298 = pneg %p87
        %p299 = pneg %p84
        %p300 = pneg %p108
        %p301 = pneg %p105
        %p302 = pneg %p129
        %p303 = pneg %p126
        %p304 = pneg %p150
        %p305 = pneg %p147
        %p306 = pneg %p171
        %p307 = pneg %p168
        %p308 = pneg %p199
        %p309 = pneg %p196
        %s310 = sand.u32 %s186, 1
        %s311 = scalar_lea.sflag [#allocation3], %s310
        %s312 = sand.u32 %s186, 1
        %s313 = smul.addr %s312, 8
        %s314 = scalar_lea.vmem [#allocation2], %s313
        %s315 = smul.u32 2, %s25
        %s316 = ssub.s32 7, %s315
        %p317 = scmp.lt.s32.totalorder %s316, 2
        %s318 = scalar_select %p317, %s316, 2
        %s319 = smul.u32 64, %s318
        %p320 = scmp.lt.s32.totalorder %s24, 1
        %s321 = scalar_select %p320, %s24, 1
        %p322 = scmp.lt.s32.totalorder %s315, 6
        %s323 = scalar_select %p322, %s315, 6
        %s324 = smul.addr %s321, 7
        %s325 = sadd.s32 %s323, %s324
        %s326 = smul.addr %s325, 4
        %s327 = scalar_lea.vmem %s0, %s326
        %s328 = smul.u32 2, %s25
        %s329 = ssub.s32 7, %s328
        %p330 = scmp.lt.s32.totalorder %s329, 2
        %s331 = scalar_select %p330, %s329, 2
        %s332 = smul.u32 64, %s331
        %s333 = sadd.s32 %s25, 1
        %s334 = smul.u32 %s333, 2
        %p335 = scmp.lt.s32.totalorder %s24, 1
        %s336 = scalar_select %p335, %s24, 1
        %p337 = scmp.lt.s32.totalorder %s334, 6
        %s338 = scalar_select %p337, %s334, 6
        %s339 = smul.addr %s336, 7
        %s340 = sadd.s32 %s338, %s339
        %s341 = smul.addr %s340, 4
        %s342 = scalar_lea.vmem %s1, %s341
        %s343 = sadd.s32 %s25, 1
        %s344 = smul.u32 %s343, 2
        %s345 = smul.u32 2, %s25
        %v347 = vld [vmem:[%s327] sm:$0xf]
        %v348 = vld [vmem:[%s327 + $0x4] sm:$0xf]
        %v349 = vld [vmem:[%s342] sm:$0x1]
        %v352 = vunpack.c.l.b16 %v347
        %v353 = vunpack.c.l.b16 %v348
        %v354 = vpack.c.b16 %v353, %v352
        %v355 = vld [vmem:[%s2] sm:$0xf]
        %s356 = scalar_lea.vmem %s2, 4
        %v357 = vld [vmem:[%s356] sm:$0xf]
        %vm358 = vsmask.f32 7424
        %v360 = vshrl.u32 %v354, 16
        %v362 = vshll.u32 %v354, 16
        %v364 = vrot.slane %v362, 1
        %v365 = vor.u32 %v360, %v364
        %v367 = vshll.u32 %v349, 16
        %v369 = vrot.slane %v367, 1
        %v370 = vsel %vm358, %v365, %v369
        %vm371 = vcmask 64512
        %v373 = vsel %vm371, %v370, 0
        %vm375 = vcmask 1043456
        %v377 = vsel %vm375, %v357, 0
        %379 = vmatprep.subr.bf16.mxu0 0
        %380 = vmatpush1.bf16.msra.mxu0 %v377
        %381 = vmatprep.subr.bf16.mxu0 0
        %382 = vmatpush1.bf16.msra.mxu0 0
        %383 = vmatprep.subr.bf16.mxu0 0
        %384 = vmatpush1.bf16.msra.mxu0 0
        %385 = vmatprep.subr.bf16.mxu0 0
        %386 = vmatpush1.bf16.msra.mxu0 0
        %387 = vmatprep.subr.bf16.mxu0 0
        %388 = vmatpush1.bf16.msra.mxu0 0
        %389 = vmatprep.subr.bf16.mxu0 0
        %390 = vmatpush1.bf16.msra.mxu0 0
        %391 = vmatprep.subr.bf16.mxu0 0
        %392 = vmatpush1.bf16.msra.mxu0 0
        %393 = vmatprep.subr.bf16.mxu0 0
        %394 = vmatpush1.bf16.msra.mxu0 0
        %395 = vmatprep.subr.bf16.mxu0 0
        %396 = vmatpush1.bf16.msra.mxu0 0
        %397 = vmatprep.subr.bf16.mxu0 0
        %398 = vmatpush1.bf16.msra.mxu0 0
        %399 = vmatprep.subr.bf16.mxu0 0
        %400 = vmatpush1.bf16.msra.mxu0 0
        %401 = vmatprep.subr.bf16.mxu0 0
        %402 = vmatpush1.bf16.msra.mxu0 0
        %403 = vmatprep.subr.bf16.mxu0 0
        %404 = vmatpush1.bf16.msra.mxu0 0
        %405 = vmatprep.subr.bf16.mxu0 0
        %406 = vmatpush1.bf16.msra.mxu0 0
        %407 = vmatprep.subr.bf16.mxu0 0
        %408 = vmatpush1.bf16.msra.mxu0 0
        %409 = vmatprep.subr.bf16.mxu0 0
        %410 = vmatpush1.bf16.msra.mxu0 0
        %411 = vmatprep.mubr.bf16.mxu0 0
        %412 = vmatmul.mubr.bf16.gmra.mrb[0].mxu0 %v373
        %v413 = vpop.f32.mrb[0].mxu0
        %v414 = vadd.f32 0.0, %v413
        %v415 = vpop.f32.mrb[0].mxu0
        %v416 = vpop.f32.mrb[0].mxu0
        %v417 = vadd.f32 0.0, %v416
        %v418 = vpop.f32.mrb[0].mxu0
        %419 = vdwg.mxu0
        %v420 = vsel %vm371, %v354, 0
        %v423 = vsel %vm375, %v355, 0
        %425 = vmatprep.subr.bf16.mxu0 0
        %426 = vmatpush1.bf16.msra.mxu0 %v423
        %427 = vmatprep.subr.bf16.mxu0 0
        %428 = vmatpush1.bf16.msra.mxu0 0
        %429 = vmatprep.subr.bf16.mxu0 0
        %430 = vmatpush1.bf16.msra.mxu0 0
        %431 = vmatprep.subr.bf16.mxu0 0
        %432 = vmatpush1.bf16.msra.mxu0 0
        %433 = vmatprep.subr.bf16.mxu0 0
        %434 = vmatpush1.bf16.msra.mxu0 0
        %435 = vmatprep.subr.bf16.mxu0 0
        %436 = vmatpush1.bf16.msra.mxu0 0
        %437 = vmatprep.subr.bf16.mxu0 0
        %438 = vmatpush1.bf16.msra.mxu0 0
        %439 = vmatprep.subr.bf16.mxu0 0
        %440 = vmatpush1.bf16.msra.mxu0 0
        %441 = vmatprep.subr.bf16.mxu0 0
        %442 = vmatpush1.bf16.msra.mxu0 0
        %443 = vmatprep.subr.bf16.mxu0 0
        %444 = vmatpush1.bf16.msra.mxu0 0
        %445 = vmatprep.subr.bf16.mxu0 0
        %446 = vmatpush1.bf16.msra.mxu0 0
        %447 = vmatprep.subr.bf16.mxu0 0
        %448 = vmatpush1.bf16.msra.mxu0 0
        %449 = vmatprep.subr.bf16.mxu0 0
        %450 = vmatpush1.bf16.msra.mxu0 0
        %451 = vmatprep.subr.bf16.mxu0 0
        %452 = vmatpush1.bf16.msra.mxu0 0
        %453 = vmatprep.subr.bf16.mxu0 0
        %454 = vmatpush1.bf16.msra.mxu0 0
        %455 = vmatprep.subr.bf16.mxu0 0
        %456 = vmatpush1.bf16.msra.mxu0 0
        %457 = vmatprep.mubr.bf16.mxu0 0
        %458 = vmatmul.mubr.bf16.gmra.mrb[0].mxu0 %v420
        %v459 = vpop.f32.mrb[0].mxu0
        %v460 = vadd.f32 %v414, %v459
        %v461 = vpop.f32.mrb[0].mxu0
        %v462 = vpop.f32.mrb[0].mxu0
        %v463 = vadd.f32 %v417, %v462
        %v464 = vpop.f32.mrb[0].mxu0
        %465 = vdwg.mxu0
        %v466 = vld [vmem:[%s3] sm:$0x1]
        %v468 = vlaneseq
        %v469 = vshrl.u32 %v468, 7
        %v470 = vsub.s32 0, %v469
        %v471 = vrot.slane %v466, %v470
        %v473 = vadd.f32 %v460, %v471
        %v474 = vadd.f32 %v463, %v471
        %v475 = vmax.f32 %v473, 0.0
        %v476 = vmax.f32 %v474, 0.0
        %v477 = vlaneseq
        %v478 = vshrl.u32 %v477, 7
        %v479 = vadd.s32 %v478, 8
        %s480 = smul.u32 %s25, 16
        %v481 = vstv %s480
        %v482 = vadd.s32 %v478, %v481
        %v483 = vadd.s32 %v479, %v481
        %vm484 = vcmp.lt.s32.totalorder %v482, 39
        %vm485 = vcmp.lt.s32.totalorder %v483, 39
        %v486 = vsel %vm484, 1, 0
        %v487 = vsel %vm485, 1, 0
        %vm488 = vcmp.eq.s32.totalorder %v486, 1
        %vm489 = vcmp.eq.s32.totalorder %v487, 1
        %v490 = vsel %vm488, %v475, 0.0
        %v491 = vsel %vm489, %v476, 0.0
        %v492 = vpack.c.bf16 %v491, %v490
        %v493 = vld [vmem:[%s4] sm:$0xff]
        %v494 = vld [vmem:[%s4 + $0x8] sm:$0xff]
        %v495 = vld [vmem:[%s4 + $0x10] sm:$0xff]
        %v496 = vld [vmem:[%s4 + $0x18] sm:$0xff]
        %v497 = vld [vmem:[%s4 + $0x20] sm:$0xff]
        %v498 = vld [vmem:[%s4 + $0x28] sm:$0xff]
        %v499 = vld [vmem:[%s4 + $0x30] sm:$0xff]
        %v500 = vld [vmem:[%s4 + $0x38] sm:$0xff]
        %v501 = vld [vmem:[%s4 + $0x40] sm:$0xff]
        %v502 = vld [vmem:[%s4 + $0x48] sm:$0xff]
        %v503 = vld [vmem:[%s4 + $0x50] sm:$0xff]
        %v504 = vld [vmem:[%s4 + $0x58] sm:$0xff]
        %v505 = vld [vmem:[%s4 + $0x60] sm:$0xff]
        %v506 = vld [vmem:[%s4 + $0x68] sm:$0xff]
        %v507 = vld [vmem:[%s4 + $0x70] sm:$0xff]
        %v508 = vld [vmem:[%s4 + $0x78] sm:$0xff]
        %v509 = vld [vmem:[%s5] sm:$0x3]
        %v511 = vlaneseq
        %v512 = vshrl.u32 %v511, 7
        %v513 = vsub.s32 0, %v512
        %v514 = vrot.slane %v509, %v513
        %v515 = vlaneseq
        %v516 = vshrl.u32 %v515, 7
        %v517 = vsub.s32 1, %v516
        %v518 = vrot.slane %v509, %v517
        %v537 = vunpack.c.l.b16 %v493
        %v538 = vunpack.c.h.b16 %v493
        %v539 = vunpack.c.l.b16 %v494
        %v540 = vunpack.c.h.b16 %v494
        %v541 = vunpack.c.l.b16 %v495
        %v542 = vunpack.c.h.b16 %v495
        %v543 = vunpack.c.l.b16 %v496
        %v544 = vunpack.c.h.b16 %v496
        %v545 = vunpack.c.l.b16 %v497
        %v546 = vunpack.c.h.b16 %v497
        %v547 = vunpack.c.l.b16 %v498
        %v548 = vunpack.c.h.b16 %v498
        %v549 = vunpack.c.l.b16 %v499
        %v550 = vunpack.c.h.b16 %v499
        %v551 = vunpack.c.l.b16 %v500
        %v552 = vunpack.c.h.b16 %v500
        %v553 = vunpack.c.l.b16 %v501
        %v554 = vunpack.c.h.b16 %v501
        %v555 = vunpack.c.l.b16 %v502
        %v556 = vunpack.c.h.b16 %v502
        %v557 = vunpack.c.l.b16 %v503
        %v558 = vunpack.c.h.b16 %v503
        %v559 = vunpack.c.l.b16 %v504
        %v560 = vunpack.c.h.b16 %v504
        %v561 = vunpack.c.l.b16 %v505
        %v562 = vunpack.c.h.b16 %v505
        %v563 = vunpack.c.l.b16 %v506
        %v564 = vunpack.c.h.b16 %v506
        %v565 = vunpack.c.l.b16 %v507
        %v566 = vunpack.c.h.b16 %v507
        %v567 = vunpack.c.l.b16 %v508
        %v568 = vunpack.c.h.b16 %v508
        %v569 = vpack.c.b16 %v539, %v537
        %v570 = vpack.c.b16 %v540, %v538
        %v571 = vpack.c.b16 %v543, %v541
        %v572 = vpack.c.b16 %v544, %v542
        %v573 = vpack.c.b16 %v547, %v545
        %v574 = vpack.c.b16 %v548, %v546
        %v575 = vpack.c.b16 %v551, %v549
        %v576 = vpack.c.b16 %v552, %v550
        %v577 = vpack.c.b16 %v555, %v553
        %v578 = vpack.c.b16 %v556, %v554
        %v579 = vpack.c.b16 %v559, %v557
        %v580 = vpack.c.b16 %v560, %v558
        %v581 = vpack.c.b16 %v563, %v561
        %v582 = vpack.c.b16 %v564, %v562
        %v583 = vpack.c.b16 %v567, %v565
        %v584 = vpack.c.b16 %v568, %v566
        %601 = vmatprep.subr.bf16.mxu0 %v570
        %602 = vmatpush1.bf16.msra.mxu0 %v569
        %603 = vmatprep.subr.bf16.mxu0 %v572
        %604 = vmatpush1.bf16.msra.mxu0 %v571
        %605 = vmatprep.subr.bf16.mxu0 %v574
        %606 = vmatpush1.bf16.msra.mxu0 %v573
        %607 = vmatprep.subr.bf16.mxu0 %v576
        %608 = vmatpush1.bf16.msra.mxu0 %v575
        %609 = vmatprep.subr.bf16.mxu0 %v578
        %610 = vmatpush1.bf16.msra.mxu0 %v577
        %611 = vmatprep.subr.bf16.mxu0 %v580
        %612 = vmatpush1.bf16.msra.mxu0 %v579
        %613 = vmatprep.subr.bf16.mxu0 %v582
        %614 = vmatpush1.bf16.msra.mxu0 %v581
        %615 = vmatprep.subr.bf16.mxu0 %v584
        %616 = vmatpush1.bf16.msra.mxu0 %v583
        %617 = vmatprep.subr.bf16.mxu0 0
        %618 = vmatpush1.bf16.msra.mxu0 0
        %619 = vmatprep.subr.bf16.mxu0 0
        %620 = vmatpush1.bf16.msra.mxu0 0
        %621 = vmatprep.subr.bf16.mxu0 0
        %622 = vmatpush1.bf16.msra.mxu0 0
        %623 = vmatprep.subr.bf16.mxu0 0
        %624 = vmatpush1.bf16.msra.mxu0 0
        %625 = vmatprep.subr.bf16.mxu0 0
        %626 = vmatpush1.bf16.msra.mxu0 0
        %627 = vmatprep.subr.bf16.mxu0 0
        %628 = vmatpush1.bf16.msra.mxu0 0
        %629 = vmatprep.subr.bf16.mxu0 0
        %630 = vmatpush1.bf16.msra.mxu0 0
        %631 = vmatprep.subr.bf16.mxu0 0
        %632 = vmatpush1.bf16.msra.mxu0 0
        %633 = vmatprep.mubr.bf16.mxu0 0
        %634 = vmatmul.mubr.bf16.gmra.mrb[0].mxu0 %v492
        %v635 = vpop.f32.mrb[0].mxu0
        %v636 = vadd.f32 %v514, %v635
        %v637 = vpop.f32.mrb[0].mxu0
        %v638 = vadd.f32 %v518, %v637
        %v639 = vpop.f32.mrb[0].mxu0
        %v640 = vadd.f32 %v514, %v639
        %v641 = vpop.f32.mrb[0].mxu0
        %v642 = vadd.f32 %v518, %v641
        %643 = vdwg.mxu0
        %v644 = vxor.u32 %v638, 2147483648
        %v645 = vxor.u32 %v642, 2147483648
        %v646 = vmul.f32 %v644, 1.442695
        %v647 = vpow.pop %v646
        %v648 = vmul.f32 %v645, 1.442695
        %v649 = vpow.pop %v648
        %v650 = vadd.f32 %v647, 1.0
        %v651 = vadd.f32 %v649, 1.0
        %v652 = vrcp.pop %v650
        %v653 = vmul.f32 1.0, %v652
        %v654 = vrcp.pop %v651
        %v655 = vmul.f32 1.0, %v654
        %v656 = vmul.f32 %v636, %v653
        %v657 = vmul.f32 %v640, %v655
        %v658 = vpack.c.bf16 %v657, %v656
        %v660 = vunpack.c.l.b16 %v658
        %v661 = vunpack.c.h.b16 %v658
        %v662 = vpack.c.b16 %v660, %v660
        %v663 = vpack.c.b16 %v661, %v661
        %666 = vst [vmem:[%s314] sm:$0xf] %v662
        %667 = vst [vmem:[%s314 + $0x4] sm:$0xf] %v663
        %s668 = sand.u32 %s186, 1
        %s669 = scalar_lea.sflag [#allocation3], %s668
        %s670 = sand.u32 %s186, 1
        %s671 = smul.addr %s670, 8
        %s672 = scalar_lea.vmem [#allocation2], %s671
        // Predicated region
        $region45: #{tpu_custom_call.1} parent=43 // pred_check
          %p673 = pneg %p196
        $region46: #{tpu_custom_call.1} parent=43 // pred_check_branch
          %675 = sbr.rel (%p673) target = $region48
        $region47: #{tpu_custom_call.1} parent=43 // pred_region
          %s676 = smul.u32 2, %s25
          %s678 = ssub.s32 128, 128
          %679 = vsyncadd %s669, %s678
          %s680 = smul.addr %s24, 6
          %s681 = sadd.s32 %s676, %s680
          %s682 = smul.addr %s681, 64
          %s683 = scalar_lea.hbm %s6, %s682
          %s684 = sshll.u32 %s672, 4
          %s685 = int_to_ptr.vmem [resolvable:$true] %s684
          %690 = dma.vmem_to_hbm [thread:$0]  %s685, 128, %s683, %s669, 64, 64, 4
        $region48: #{tpu_custom_call.1} parent=43 // pred_fallthru
          _
      $region44: #{tpu_custom_call.1} parent=5 // pred_fallthru
        _
      %p691 = scmp.le.s32.totalorder 2, %s15
      // Predicated region
      $region49: #{tpu_custom_call.1} parent=5 // pred_check
        %p692 = pneg %p691
      $region50: #{tpu_custom_call.1} parent=5 // pred_check_branch
        %694 = sbr.rel (%p692) target = $region52
      $region51: #{tpu_custom_call.1} parent=5 // pred_region
        %s695 = ssub.s32 %s15, 2
        // Predicated region
        $region53: #{tpu_custom_call.1} parent=51 // pred_check
          %p696 = pneg %p202
        $region54: #{tpu_custom_call.1} parent=51 // pred_check_branch
          %698 = sbr.rel (%p696) target = $region56
        $region55: #{tpu_custom_call.1} parent=51 // pred_region
          %s699 = sand.u32 %s187, 1
          %s700 = scalar_lea.sflag [#allocation3], %s699
          %s701 = sand.u32 %s187, 1
          %s702 = smul.addr %s701, 8
          %s703 = scalar_lea.vmem [#allocation2], %s702
          %704 = dma.done %s700, 128
        $region56: #{tpu_custom_call.1} parent=51 // pred_fallthru
          _
      $region52: #{tpu_custom_call.1} parent=5 // pred_fallthru
        _
    $region6: #{tpu_custom_call.1} parent=1 // loop_footer
      %s19 = sadd.s32 1, %s15
    $region7: #{tpu_custom_call.1} parent=1 // loop_footer_branch
      %14 = sbr.rel target = $region3
    $region8: #{tpu_custom_call.1} parent=1 // loop_exit
      _
    %705 = vsyncpa [#allocation3], 1
    %s706 = scalar_lea.sflag [#allocation3], 1
    %707 = vsyncpa %s706, 1

</llo_original>
